<compile_context>
chip_gen: v7x
topology: tpu7x:2x2x1
jax: 0.10.0
libtpu: 0.0.40
codegen_flags: <defaults>
</compile_context>

<pallas_src>
import jax
import jax.numpy as jnp
from jax import lax
from jax.experimental import pallas as pl
from jax.experimental.pallas import tpu as pltpu

FEATURES_DIM = 64
H1, H2, OUT = 32, 16, 6

_VMEM_IO_BUDGET = 20 * 1024 * 1024   # double-buffered x + out tiles (lane-padded)
_VMEM_LIMIT_BYTES = 32 * 1024 * 1024  # explicit scoped-VMEM limit (safe on v5e/v6e/v7x)


def _round_up(n, m):
    return ((n + m - 1) // m) * m


def _cdiv(a, b):
    return (a + b - 1) // b


def _fused_cls_kernel(x_ref, w_ref, b_ref, o_ref):
    # x_ref: (tb, Lin)   w_ref: (Lin, Lout)   b_ref: (1, Lout)   o_ref: (tb, Lout)
    y = jnp.dot(x_ref[...], w_ref[...], preferred_element_type=jnp.float32)
    o_ref[...] = (y + b_ref[...]).astype(o_ref.dtype)


def _fuse_affine(params):
    """Collapse Linear(64->32)->Linear(32->16)->Linear(16->6) into one affine map."""
    f32 = jnp.float32
    hp = lax.Precision.HIGHEST
    w1t = params["w1"].astype(f32).T          # (64, 32)
    w2t = params["w2"].astype(f32).T          # (32, 16)
    w3t = params["w3"].astype(f32).T          # (16, 6)
    w23 = jnp.dot(w2t, w3t, precision=hp)     # (32, 6)
    w_eff = jnp.dot(w1t, w23, precision=hp)   # (64, 6)
    b_eff = (jnp.dot(params["b1"].astype(f32)[None, :], w23, precision=hp)
             + jnp.dot(params["b2"].astype(f32)[None, :], w3t, precision=hp)
             + params["b3"].astype(f32)[None, :])                # (1, 6)
    return w_eff, b_eff


def cls_lt_forward(x, params, *, tb=32768, min_pallas_batch=4096):
    """Forward pass of ClsLt: y = x @ W_eff + b_eff.

    x: (B, 64) float array.
    params: PyTorch-style (out, in) weights and (out,) biases.
    tb: requested batch tile in LOGICAL rows; capped by the VMEM I/O budget
        (footprint is counted with 128-lane padding) and by B.
    min_pallas_batch: below this batch size the kernel-launch/pipeline cost
        exceeds the HBM time, so a plain XLA dot is used instead.
    """
    B, F = x.shape
    assert F == FEATURES_DIM
    f32 = jnp.float32
    x = x.astype(f32)

    w_eff, b_eff = _fuse_affine(params)

    # Small-batch fast path: skip the kernel entirely.
    if B < min_pallas_batch:
        return jnp.dot(x, w_eff, precision=lax.Precision.HIGHEST) + b_eff[0]

    # --- lane-dense fold of the feature axis --------------------------------
    fold = 4 if B % 4 == 0 else (2 if B % 2 == 0 else 1)
    Bf = B // fold
    Lin = FEATURES_DIM * fold      # 256 / 128 / 64
    Lout = OUT * fold              # 24  / 12  / 6
    if fold > 1:
        xf = x.reshape(Bf, Lin)                                   # free (contiguous)
        wf = jnp.kron(jnp.eye(fold, dtype=f32), w_eff)            # block-diag (Lin, Lout)
        bf = jnp.tile(b_eff, (1, fold))                           # (1, Lout)
    else:
        xf, wf, bf = x, w_eff, b_eff

    # --- batch tile: as large as the VMEM budget allows ---------------------
    lanes_in = _round_up(Lin, 128)
    lanes_out = _round_up(Lout, 128)           # output rows are lane-padded to 128
    per_row_bytes = (lanes_in + lanes_out) * 4 * 2   # f32, double-buffered x + out
    budget_rows = max(8, (_VMEM_IO_BUDGET // per_row_bytes) // 8 * 8)

    if Bf <= 8:
        tbf = Bf                               # single full-extent block
    else:
        tb_req = max(8, _round_up(max(tb // fold, 1), 8))
        tbf = max(8, min(tb_req, budget_rows, _round_up(Bf, 8)))
        # Ensure >= 2 grid steps when there is enough work so ("parallel",)
        # can shard the batch across both TensorCores on v7x.
        if _cdiv(Bf, tbf) == 1 and Bf >= 16:
            tbf = max(8, _round_up(_cdiv(Bf, 2), 8))

    grid = (_cdiv(Bf, tbf),)   # ragged tail handled by Pallas' masked edge block

    cost = pl.CostEstimate(
        flops=2 * B * FEATURES_DIM * OUT,
        transcendentals=0,
        bytes_accessed=B * FEATURES_DIM * 4 + B * OUT * 4 + Lin * Lout * 4 + Lout * 4,
    )

    out = pl.pallas_call(
        _fused_cls_kernel,
        out_shape=jax.ShapeDtypeStruct((Bf, Lout), f32),
        grid_spec=pltpu.PrefetchScalarGridSpec(
            num_scalar_prefetch=0,
            grid=grid,
            in_specs=[
                pl.BlockSpec((tbf, Lin), lambda i: (i, 0)),     # x tile (streamed)
                pl.BlockSpec((Lin, Lout), lambda i: (0, 0)),    # fused W (resident)
                pl.BlockSpec((1, Lout), lambda i: (0, 0)),      # fused b (resident)
            ],
            out_specs=pl.BlockSpec((tbf, Lout), lambda i: (i, 0)),
        ),
        compiler_params=pltpu.CompilerParams(
            dimension_semantics=("parallel",),
            vmem_limit_bytes=_VMEM_LIMIT_BYTES,
        ),
        cost_estimate=cost,
    )(xf, wf, bf)

    return out.reshape(B, OUT)


def init_params(key):
    """Deterministic synthetic init mimicking PyTorch Linear shapes (out, in)."""
    ks = jax.random.split(key, 6)

    def lin_init(kw, kb, out_f, in_f):
        bound = 1.0 / jnp.sqrt(in_f)
        w = jax.random.uniform(kw, (out_f, in_f), jnp.float32, -bound, bound)
        b = jax.random.uniform(kb, (out_f,), jnp.float32, -bound, bound)
        return w, b

    w1, b1 = lin_init(ks[0], ks[1], H1, FEATURES_DIM)
    w2, b2 = lin_init(ks[2], ks[3], H2, H1)
    w3, b3 = lin_init(ks[4], ks[5], OUT, H2)
    return {"w1": w1, "b1": b1, "w2": w2, "b2": b2, "w3": w3, "b3": b3}


def _reference(x, params):
    hp = lax.Precision.HIGHEST
    ref = jnp.dot(x, params["w1"].T, precision=hp) + params["b1"]
    ref = jnp.dot(ref, params["w2"].T, precision=hp) + params["b2"]
    ref = jnp.dot(ref, params["w3"].T, precision=hp) + params["b3"]
    return ref


if __name__ == "__main__":
    key = jax.random.PRNGKey(0)
    kx, kx2, kx3, kp = jax.random.split(key, 4)
    params = init_params(kp)

    # 1) Small aligned batch -> fold=4, single grid step (force Pallas path).
    B = 8
    x = jax.random.normal(kx, (B, FEATURES_DIM), jnp.float32)
    out = jax.block_until_ready(cls_lt_forward(x, params, min_pallas_batch=0))
    ref = _reference(x, params)
    assert out.shape == (B, OUT)
    assert jnp.allclose(out, ref, atol=1e-4, rtol=1e-4)

    # 2) Non-divisible batch, multi-step grid with masked tail block:
    #    B=200, tb=64 -> fold=4, Bf=50, tile=16 folded rows, grid=(4,).
    B2 = 200
    x2 = jax.random.normal(kx2, (B2, FEATURES_DIM), jnp.float32)
    out2 = jax.block_until_ready(cls_lt_forward(x2, params, tb=64, min_pallas_batch=0))
    ref2 = _reference(x2, params)
    assert out2.shape == (B2, OUT)
    assert jnp.allclose(out2, ref2, atol=1e-4, rtol=1e-4)

    # 3) Odd batch -> fold=1 path + forced 2-step grid (megacore split) + tail mask.
    B3 = 25
    x3 = jax.random.normal(kx3, (B3, FEATURES_DIM), jnp.float32)
    out3 = jax.block_until_ready(cls_lt_forward(x3, params, min_pallas_batch=0))
    ref3 = _reference(x3, params)
    assert out3.shape == (B3, OUT)
    assert jnp.allclose(out3, ref3, atol=1e-4, rtol=1e-4)

    # 4) Default dispatch: small batch takes the plain-XLA fast path.
    out4 = jax.block_until_ready(cls_lt_forward(x, params))
    assert jnp.allclose(out4, ref, atol=1e-4, rtol=1e-4)

    print("KERNEL_OK")
</pallas_src>

<mosaic_0001>
module attributes {stable_mosaic.version = 11 : i64} {
  func.func @_fused_cls_kernel(%arg0: i32, %arg1: memref<2x256xf32, #tpu.memory_space<vmem>>, %arg2: memref<256x24xf32, #tpu.memory_space<vmem>>, %arg3: memref<1x24xf32, #tpu.memory_space<vmem>>, %arg4: memref<2x24xf32, #tpu.memory_space<vmem>>) attributes {dimension_semantics = [#tpu.dimension_semantics<parallel>], iteration_bounds = array<i64: 1>, scalar_prefetch = 0 : i64, scratch_operands = 0 : i64, tpu.core_type = #tpu.core_type<tc>, window_params = [{transform_indices = @transform_0, window_bounds = array<i64: 2, 256>}, {pipeline_mode = #tpu.pipeline_mode<synchronous>, transform_indices = @transform_1, window_bounds = array<i64: 256, 24>}, {pipeline_mode = #tpu.pipeline_mode<synchronous>, transform_indices = @transform_2, window_bounds = array<i64: 1, 24>}, {transform_indices = @transform_3, window_bounds = array<i64: 2, 24>}]} {
    %c0 = arith.constant 0 : index
    %c0_0 = arith.constant 0 : index
    %0 = vector.load %arg1[%c0, %c0_0] : memref<2x256xf32, #tpu.memory_space<vmem>>, vector<2x256xf32>
    %c0_1 = arith.constant 0 : index
    %c0_2 = arith.constant 0 : index
    %1 = vector.load %arg2[%c0_1, %c0_2] : memref<256x24xf32, #tpu.memory_space<vmem>>, vector<256x24xf32>
    %cst = arith.constant dense<0.000000e+00> : vector<2x24xf32>
    %2 = tpu.matmul %0, %1, %cst {dimension_numbers = #tpu.dot_dimension_numbers<[1], [0], [0], [1], [0, 0, 1, 1], [], []>} : vector<2x256xf32>, vector<256x24xf32>, vector<2x24xf32> -> vector<2x24xf32>
    %c0_3 = arith.constant 0 : index
    %c0_4 = arith.constant 0 : index
    %3 = vector.load %arg3[%c0_3, %c0_4] : memref<1x24xf32, #tpu.memory_space<vmem>>, vector<1x24xf32>
    %4 = vector.broadcast %3 : vector<1x24xf32> to vector<2x24xf32>
    %5 = arith.addf %2, %4 : vector<2x24xf32>
    %c0_5 = arith.constant 0 : index
    %c0_6 = arith.constant 0 : index
    %6 = vector.load %arg4[%c0_5, %c0_6] : memref<2x24xf32, #tpu.memory_space<vmem>>, vector<2x24xf32>
    tpu.vector_store %arg4[%c0_5, %c0_6], %5 {strides = array<i32>} : memref<2x24xf32, #tpu.memory_space<vmem>>, vector<2x24xf32>,
    return
  }
  func.func @transform_0(%arg0: i32) -> (i32, i32) {
    %c0_i32 = arith.constant 0 : i32
    %c0_i32_0 = arith.constant 0 : i32
    return %arg0, %c0_i32 : i32, i32
  }
  func.func @transform_1(%arg0: i32) -> (i32, i32) {
    %c0_i32 = arith.constant 0 : i32
    %c0_i32_0 = arith.constant 0 : i32
    %c0_i32_1 = arith.constant 0 : i32
    return %c0_i32, %c0_i32_0 : i32, i32
  }
  func.func @transform_2(%arg0: i32) -> (i32, i32) {
    %c0_i32 = arith.constant 0 : i32
    %c0_i32_0 = arith.constant 0 : i32
    %c0_i32_1 = arith.constant 0 : i32
    return %c0_i32, %c0_i32_0 : i32, i32
  }
  func.func @transform_3(%arg0: i32) -> (i32, i32) {
    %c0_i32 = arith.constant 0 : i32
    %c0_i32_0 = arith.constant 0 : i32
    return %arg0, %c0_i32 : i32, i32
  }
}

</mosaic_0001>

<llo_original>
// kernel: tpu_custom_call.1
$region0: #{tpu_custom_call.1}
  #allocation0 [shape = 'u32[]', space=smem, size = 0x4, offset = 0x4, fixed_abs, tag = 'smem constant byte address 0x4 - core index']
  #allocation1 [shape = 'u32[144,128]{1,0:T(1,128)}', space=vmem, size = 0x12000, scoped, tag = 'internal scratch']
  %s0 = inlined_call_operand.vmem [shape: f32[2,256], index: 0, kind: input, shape index: {}]
  %s1 = inlined_call_operand.vmem [shape: f32[256,24], index: 1, kind: input, shape index: {}]
  %s2 = inlined_call_operand.vmem [shape: f32[1,24], index: 2, kind: input, shape index: {}]
  %s3 = inlined_call_operand.hbm [shape: f32[2,24], index: 3, kind: output, shape index: {}]
  %s4 = sld [smem:[#allocation0]]
  $region22: #{tpu_custom_call.1} parent=0
    _
  %s6 = ssub.s32 1, %s4
  %s7 = scalar_select 0, %s6, %s4
  $region1: #{tpu_custom_call.1} parent=0
    #allocation2 [shape = 'u8[1024]{0}', space=vmem, size = 0x400, scoped, tag = 'output window, operand 0, single buffered']
    #allocation3 [shape = 's32[1]{0}', space=sflag, size = 0x4, scoped, tag = 'scoped memory for tpu_custom_call.1']
    %8 = vsyncpa [#allocation3], 0
    // Predicated region
    $region2: #{tpu_custom_call.1} parent=1 // pred_check
      _
    $region3: #{tpu_custom_call.1} parent=1 // pred_check_branch
      %10 = sbr.rel (0) target = $region5
    $region4: #{tpu_custom_call.1} parent=1 // pred_region
      _
    $region5: #{tpu_custom_call.1} parent=1 // pred_fallthru
      _
    // Predicated region
    $region6: #{tpu_custom_call.1} parent=1 // pred_check
      _
    $region7: #{tpu_custom_call.1} parent=1 // pred_check_branch
      %12 = sbr.rel (0) target = $region9
    $region8: #{tpu_custom_call.1} parent=1 // pred_region
      _
    $region9: #{tpu_custom_call.1} parent=1 // pred_fallthru
      _
    // Predicated region
    $region10: #{tpu_custom_call.1} parent=1 // pred_check
      _
    $region11: #{tpu_custom_call.1} parent=1 // pred_check_branch
      %14 = sbr.rel (0) target = $region13
    $region12: #{tpu_custom_call.1} parent=1 // pred_region
      _
    $region13: #{tpu_custom_call.1} parent=1 // pred_fallthru
      _
    %v15 = vld [vmem:[%s0] sm:$0xf]
    %v16 = vld [vmem:[%s1] sm:$0xff]
    %v17 = vld [vmem:[%s1 + $0x8] sm:$0xff]
    %v18 = vld [vmem:[%s1 + $0x10] sm:$0xff]
    %v19 = vld [vmem:[%s1 + $0x18] sm:$0xff]
    %v20 = vld [vmem:[%s1 + $0x20] sm:$0xff]
    %v21 = vld [vmem:[%s1 + $0x28] sm:$0xff]
    %v22 = vld [vmem:[%s1 + $0x30] sm:$0xff]
    %v23 = vld [vmem:[%s1 + $0x38] sm:$0xff]
    %v24 = vld [vmem:[%s1 + $0x40] sm:$0xff]
    %v25 = vld [vmem:[%s1 + $0x48] sm:$0xff]
    %v26 = vld [vmem:[%s1 + $0x50] sm:$0xff]
    %v27 = vld [vmem:[%s1 + $0x58] sm:$0xff]
    %v28 = vld [vmem:[%s1 + $0x60] sm:$0xff]
    %v29 = vld [vmem:[%s1 + $0x68] sm:$0xff]
    %v30 = vld [vmem:[%s1 + $0x70] sm:$0xff]
    %v31 = vld [vmem:[%s1 + $0x78] sm:$0xff]
    %v32 = vld [vmem:[%s1 + $0x80] sm:$0xff]
    %v33 = vld [vmem:[%s1 + $0x88] sm:$0xff]
    %v34 = vld [vmem:[%s1 + $0x90] sm:$0xff]
    %v35 = vld [vmem:[%s1 + $0x98] sm:$0xff]
    %v36 = vld [vmem:[%s1 + $0xa0] sm:$0xff]
    %v37 = vld [vmem:[%s1 + $0xa8] sm:$0xff]
    %v38 = vld [vmem:[%s1 + $0xb0] sm:$0xff]
    %v39 = vld [vmem:[%s1 + $0xb8] sm:$0xff]
    %v40 = vld [vmem:[%s1 + $0xc0] sm:$0xff]
    %v41 = vld [vmem:[%s1 + $0xc8] sm:$0xff]
    %v42 = vld [vmem:[%s1 + $0xd0] sm:$0xff]
    %v43 = vld [vmem:[%s1 + $0xd8] sm:$0xff]
    %v44 = vld [vmem:[%s1 + $0xe0] sm:$0xff]
    %v45 = vld [vmem:[%s1 + $0xe8] sm:$0xff]
    %v46 = vld [vmem:[%s1 + $0xf0] sm:$0xff]
    %v47 = vld [vmem:[%s1 + $0xf8] sm:$0xff]
    %v48 = vld [vmem:[%s2] sm:$0x1]
    %v50 = vlaneseq
    %v51 = vshrl.u32 %v50, 7
    %v52 = vsub.s32 0, %v51
    %v53 = vrot.slane %v48, %v52
    %v57 = vunpack.c.l.s4 1983009808
    %v58 = vunpack.c.0.s8 %v57
    %v59 = vlaneseq
    %v60 = vshrl.u32 %v59, 7
    %v61 = vsub.s32 %v58, %v60
    %v62 = vrot.slane %v15, %v61
    %v63 = vcombine.high %v62, %v62
    %66 = vmatprep.subr.mxu0 0.0
    %67 = vmatpush1.msra.mxu0 %v16
    %68 = vmatprep.subr.mxu0 0.0
    %69 = vmatpush1.msra.mxu0 %v17
    %70 = vmatprep.subr.mxu0 0.0
    %71 = vmatpush1.msra.mxu0 %v18
    %72 = vmatprep.subr.mxu0 0.0
    %73 = vmatpush1.msra.mxu0 %v19
    %74 = vmatprep.subr.mxu0 0.0
    %75 = vmatpush1.msra.mxu0 %v20
    %76 = vmatprep.subr.mxu0 0.0
    %77 = vmatpush1.msra.mxu0 %v21
    %78 = vmatprep.subr.mxu0 0.0
    %79 = vmatpush1.msra.mxu0 %v22
    %80 = vmatprep.subr.mxu0 0.0
    %81 = vmatpush1.msra.mxu0 %v23
    %82 = vmatprep.subr.mxu0 0.0
    %83 = vmatpush1.msra.mxu0 %v24
    %84 = vmatprep.subr.mxu0 0.0
    %85 = vmatpush1.msra.mxu0 %v25
    %86 = vmatprep.subr.mxu0 0.0
    %87 = vmatpush1.msra.mxu0 %v26
    %88 = vmatprep.subr.mxu0 0.0
    %89 = vmatpush1.msra.mxu0 %v27
    %90 = vmatprep.subr.mxu0 0.0
    %91 = vmatpush1.msra.mxu0 %v28
    %92 = vmatprep.subr.mxu0 0.0
    %93 = vmatpush1.msra.mxu0 %v29
    %94 = vmatprep.subr.mxu0 0.0
    %95 = vmatpush1.msra.mxu0 %v30
    %96 = vmatprep.subr.mxu0 0.0
    %97 = vmatpush1.msra.mxu0 %v31
    %98 = vmatprep.subr.mxu0 0.0
    %99 = vmatpush1.msra.mxu0 %v32
    %100 = vmatprep.subr.mxu0 0.0
    %101 = vmatpush1.msra.mxu0 %v33
    %102 = vmatprep.subr.mxu0 0.0
    %103 = vmatpush1.msra.mxu0 %v34
    %104 = vmatprep.subr.mxu0 0.0
    %105 = vmatpush1.msra.mxu0 %v35
    %106 = vmatprep.subr.mxu0 0.0
    %107 = vmatpush1.msra.mxu0 %v36
    %108 = vmatprep.subr.mxu0 0.0
    %109 = vmatpush1.msra.mxu0 %v37
    %110 = vmatprep.subr.mxu0 0.0
    %111 = vmatpush1.msra.mxu0 %v38
    %112 = vmatprep.subr.mxu0 0.0
    %113 = vmatpush1.msra.mxu0 %v39
    %114 = vmatprep.subr.mxu0 0.0
    %115 = vmatpush1.msra.mxu0 %v40
    %116 = vmatprep.subr.mxu0 0.0
    %117 = vmatpush1.msra.mxu0 %v41
    %118 = vmatprep.subr.mxu0 0.0
    %119 = vmatpush1.msra.mxu0 %v42
    %120 = vmatprep.subr.mxu0 0.0
    %121 = vmatpush1.msra.mxu0 %v43
    %122 = vmatprep.subr.mxu0 0.0
    %123 = vmatpush1.msra.mxu0 %v44
    %124 = vmatprep.subr.mxu0 0.0
    %125 = vmatpush1.msra.mxu0 %v45
    %126 = vmatprep.subr.mxu0 0.0
    %127 = vmatpush1.msra.mxu0 %v46
    %128 = vmatprep.subr.mxu0 0.0
    %129 = vmatpush1.msra.mxu0 %v47
    %130 = vmatprep.mubr.f32.mxu0 %v63
    %131 = vmatmul.mubr.f32.gmra.mrb[0].mxu0 %v62
    %v132 = vpop.f32.mrb[0].mxu0
    %v133 = vadd.f32 %v53, %v132
    %v134 = vpop.f32.mrb[0].mxu0
    %135 = vdwg.mxu0
    %vm136 = vcmask 189440
    %137 = vst.msk [vmem:[#allocation2] sm:$0x3] %vm136, %v133
    // Predicated region
    $region14: #{tpu_custom_call.1} parent=1 // pred_check
      _
    $region15: #{tpu_custom_call.1} parent=1 // pred_check_branch
      %139 = sbr.rel (0) target = $region17
    $region16: #{tpu_custom_call.1} parent=1 // pred_region
      %s141 = ssub.s32 32, 32
      %142 = vsyncadd [#allocation3], %s141
      %s144 = sshll.u32 [#allocation2], 4
      %s145 = int_to_ptr.vmem [resolvable:$true] %s144
      %147 = dma.vmem_to_hbm [thread:$0]  %s145, 32, %s3, [#allocation3]
    $region17: #{tpu_custom_call.1} parent=1 // pred_fallthru
      _
    // Predicated region
    $region18: #{tpu_custom_call.1} parent=1 // pred_check
      _
    $region19: #{tpu_custom_call.1} parent=1 // pred_check_branch
      %149 = sbr.rel (0) target = $region21
    $region20: #{tpu_custom_call.1} parent=1 // pred_region
      %150 = dma.done [#allocation3], 32
    $region21: #{tpu_custom_call.1} parent=1 // pred_fallthru
      _
    %151 = vsyncpa [#allocation3], 1

</llo_original>
